<compile_context>
chip_gen: v5e
topology: v5e:2x2
jax: 0.10.0
libtpu: 0.0.40
codegen_flags: <defaults>
</compile_context>

<pallas_src>
import functools

import jax
import jax.numpy as jnp
from jax import lax
from jax.experimental import pallas as pl
from jax.experimental.pallas import tpu as pltpu


def _rijal_kernel(x_ref, waug_ref, wtv_ref, coeffs_ref, offset_ref, out_ref,
                  *, num_layers, seq_len, emb_dim):
    # x:      (B_tile, S, F_pad)  f32
    # waug:   (F_pad, E)          f32   (zero rows beyond S+1)
    # wtv:    (L, E, 2E)          f32   ( Wq@Wk^T | Wv  concatenated on lanes)
    # coeffs: (1, S*E)            f32
    # offset: (1, 1)              f32   (SMEM scalar)
    # out:    (1, B_tile)         f32
    bt = x_ref.shape[0]
    S = seq_len
    E = emb_dim

    # Flatten batch into the matmul M dimension.
    x = x_ref[...].reshape(bt * S, x_ref.shape[2])               # (bt*S, F_pad)
    waug = waug_ref[...]                                         # (F_pad, E)

    # attended_values = cat(x[:,:,:S] @ random_matrix, x[:,:,-1:]) == x @ W_aug
    av = jnp.dot(x, waug, preferred_element_type=jnp.float32)    # (bt*S, E)

    for i in range(num_layers):
        wtv = wtv_ref[i]                                         # (E, 2E)
        # Single fused projection matmul per layer:
        #   tv[:, :E]  = av @ (Wq Wk^T)   (score-path projection)
        #   tv[:, E:]  = av @ Wv          (value projection)
        tv = jnp.dot(av, wtv, preferred_element_type=jnp.float32)  # (bt*S, 2E)
        t = tv[:, :E].reshape(bt, S, E)
        v = tv[:, E:].reshape(bt, S, E)
        av3 = av.reshape(bt, S, E)

        # scores = (av Wq)(av Wk)^T  ==  t @ av^T  (per batch)
        scores = jnp.einsum("bqe,bke->bqk", t, av3,
                            preferred_element_type=jnp.float32)  # (bt, S, S)
        scores = scores - jnp.max(scores, axis=-1, keepdims=True)
        p = jnp.exp(scores)
        # Reciprocal on the EUP instead of a VPU divide.
        p = p * pl.reciprocal(jnp.sum(p, axis=-1, keepdims=True), approx=True)
        av = jnp.einsum("bqk,bke->bqe", p, v,
                        preferred_element_type=jnp.float32)      # (bt, S, E)
        av = av.reshape(bt * S, E)

    # einsum('bij,ij->b') as one MXU contraction, lane-dense (1, bt) output.
    coeffs = coeffs_ref[...]                                     # (1, S*E)
    av2 = av.reshape(bt, S * E)                                  # (bt, S*E)
    final = lax.dot_general(coeffs, av2, (((1,), (1,)), ((), ())),
                            preferred_element_type=jnp.float32)  # (1, bt)
    out_ref[...] = final + offset_ref[0, 0]


def rijal_forward(x, random_matrix, coeffs, offset, wq, wk, wv, *, b_tile=128):
    """x: (B, S, S+1); returns (B,) — matches _RijalEtAl.forward."""
    B, S, Sp1 = x.shape
    assert Sp1 == S + 1
    E = coeffs.shape[1]
    L = wq.shape[0]

    # Batch tiling: either one tile (b_tile == B) or 128-wide tiles, so the
    # lane dim of each output block is always either the full dim or 128.
    b_tile = min(b_tile, B)
    n_tiles = pl.cdiv(B, b_tile)
    B_pad = n_tiles * b_tile

    # Pad the feature axis to a full 128-lane width (zeros are exact: the
    # corresponding W_aug rows are zero).
    F_pad = ((Sp1 + 127) // 128) * 128

    x_pad = jnp.zeros((B_pad, S, F_pad), jnp.float32)
    x_pad = x_pad.at[:B, :, :Sp1].set(x.astype(jnp.float32))

    # Augmented projection folding the concat into one matmul.
    waug = jnp.zeros((F_pad, E), jnp.float32)
    waug = waug.at[:S, :E - 1].set(random_matrix.astype(jnp.float32))
    waug = waug.at[S, E - 1].set(1.0)

    # Per-layer fused weights: ( Wq Wk^T | Wv ) -> (L, E, 2E).  Folding
    # Wq Wk^T removes the K projection from the kernel entirely.
    wq = wq.astype(jnp.float32)
    wk = wk.astype(jnp.float32)
    wv = wv.astype(jnp.float32)
    wqk = jnp.matmul(wq, jnp.swapaxes(wk, 1, 2))                 # (L, E, E)
    wtv = jnp.concatenate([wqk, wv], axis=2)                     # (L, E, 2E)

    coeffs_flat = coeffs.astype(jnp.float32).reshape(1, S * E)
    offset2d = jnp.reshape(offset.astype(jnp.float32), (1, 1))

    out = pl.pallas_call(
        functools.partial(_rijal_kernel, num_layers=L, seq_len=S, emb_dim=E),
        grid=(n_tiles,),
        in_specs=[
            pl.BlockSpec((b_tile, S, F_pad), lambda i: (i, 0, 0)),
            pl.BlockSpec((F_pad, E), lambda i: (0, 0)),
            pl.BlockSpec((L, E, 2 * E), lambda i: (0, 0, 0)),
            pl.BlockSpec((1, S * E), lambda i: (0, 0)),
            pl.BlockSpec((1, 1), lambda i: (0, 0), memory_space=pltpu.SMEM),
        ],
        out_specs=pl.BlockSpec((1, b_tile), lambda i: (0, i)),
        out_shape=jax.ShapeDtypeStruct((1, B_pad), jnp.float32),
        compiler_params=pltpu.CompilerParams(
            dimension_semantics=("parallel",)),
    )(x_pad, waug, wtv, coeffs_flat, offset2d)
    return out[0, :B]


def _reference_forward(x, random_matrix, coeffs, offset, wq, wk, wv):
    """Pure-JAX mirror of the PyTorch forward, used as a correctness check."""
    S = random_matrix.shape[0]
    av = jnp.concatenate(
        [jnp.matmul(x[:, :, :S], random_matrix), x[:, :, -1:]], axis=2)
    for i in range(wq.shape[0]):
        q = jnp.matmul(av, wq[i])
        k = jnp.matmul(av, wk[i])
        v = jnp.matmul(av, wv[i])
        scores = jax.nn.softmax(jnp.matmul(q, jnp.swapaxes(k, 1, 2)), axis=-1)
        av = jnp.matmul(scores, v)
    return jnp.einsum("bij,ij->b", av, coeffs) + offset[0]


if __name__ == "__main__":
    B, S, E, L = 2, 8, 32, 3
    init_scale = 0.03

    key = jax.random.PRNGKey(0)
    k_rm, k_co, k_off, k_wq, k_wk, k_wv, k_x = jax.random.split(key, 7)

    # Deterministic parameter init (normal, std = init_scale), matching shapes
    # from the module's __init__.
    random_matrix = init_scale * jax.random.normal(k_rm, (S, E - 1), jnp.float32)
    coeffs = init_scale * jax.random.normal(k_co, (S, E), jnp.float32)
    offset = init_scale * jax.random.normal(k_off, (1,), jnp.float32)
    wq = init_scale * jax.random.normal(k_wq, (L, E, E), jnp.float32)
    wk = init_scale * jax.random.normal(k_wk, (L, E, E), jnp.float32)
    wv = init_scale * jax.random.normal(k_wv, (L, E, E), jnp.float32)

    # Input: one-hot position codes in the first S columns + a random scalar
    # in the last column, shape (B, S, S+1).
    onehot = jnp.broadcast_to(jnp.eye(S, dtype=jnp.float32), (B, S, S))
    last_col = jax.random.normal(k_x, (B, S, 1), jnp.float32)
    x = jnp.concatenate([onehot, last_col], axis=2)

    out = rijal_forward(x, random_matrix, coeffs, offset, wq, wk, wv)
    out = jax.block_until_ready(out)

    ref = _reference_forward(x, random_matrix, coeffs, offset, wq, wk, wv)
    assert out.shape == (B,)
    # Slightly relaxed tolerance: softmax denominator uses the EUP approximate
    # reciprocal inside the kernel (the Wq·Wk^T refactor itself is exact up to
    # f32 reassociation).
    assert jnp.allclose(out, ref, atol=1e-4, rtol=1e-3), (out, ref)

    print("KERNEL_OK")
</pallas_src>

<mosaic_0001>
module attributes {stable_mosaic.version = 11 : i64} {
  func.func @_rijal_kernel(%arg0: i32, %arg1: memref<2x8x128xf32, #tpu.memory_space<vmem>>, %arg2: memref<128x32xf32, #tpu.memory_space<vmem>>, %arg3: memref<3x32x64xf32, #tpu.memory_space<vmem>>, %arg4: memref<1x256xf32, #tpu.memory_space<vmem>>, %arg5: memref<1x1xf32, #tpu.memory_space<smem>>, %arg6: memref<1x2xf32, #tpu.memory_space<vmem>>) attributes {dimension_semantics = [#tpu.dimension_semantics<parallel>], iteration_bounds = array<i64: 1>, scalar_prefetch = 0 : i64, scratch_operands = 0 : i64, tpu.core_type = #tpu.core_type<tc>, window_params = [{transform_indices = @transform_0, window_bounds = array<i64: 2, 8, 128>}, {pipeline_mode = #tpu.pipeline_mode<synchronous>, transform_indices = @transform_1, window_bounds = array<i64: 128, 32>}, {pipeline_mode = #tpu.pipeline_mode<synchronous>, transform_indices = @transform_2, window_bounds = array<i64: 3, 32, 64>}, {pipeline_mode = #tpu.pipeline_mode<synchronous>, transform_indices = @transform_3, window_bounds = array<i64: 1, 256>}, {transform_indices = @transform_4, window_bounds = array<i64: 1, 1>}, {transform_indices = @transform_5, window_bounds = array<i64: 1, 2>}]} {
    %c0 = arith.constant 0 : index
    %c0_0 = arith.constant 0 : index
    %c0_1 = arith.constant 0 : index
    %0 = vector.load %arg1[%c0, %c0_0, %c0_1] : memref<2x8x128xf32, #tpu.memory_space<vmem>>, vector<2x8x128xf32>
    %1 = vector.shape_cast %0 : vector<2x8x128xf32> to vector<16x128xf32>
    %c0_2 = arith.constant 0 : index
    %c0_3 = arith.constant 0 : index
    %2 = vector.load %arg2[%c0_2, %c0_3] : memref<128x32xf32, #tpu.memory_space<vmem>>, vector<128x32xf32>
    %cst = arith.constant dense<0.000000e+00> : vector<16x32xf32>
    %3 = tpu.matmul %1, %2, %cst {dimension_numbers = #tpu.dot_dimension_numbers<[1], [0], [0], [1], [0, 0, 1, 1], [], []>} : vector<16x128xf32>, vector<128x32xf32>, vector<16x32xf32> -> vector<16x32xf32>
    %c0_4 = arith.constant 0 : index
    %c0_5 = arith.constant 0 : index
    %c0_6 = arith.constant 0 : index
    %4 = vector.load %arg3[%c0_4, %c0_5, %c0_6] : memref<3x32x64xf32, #tpu.memory_space<vmem>>, vector<1x32x64xf32>
    %5 = vector.shape_cast %4 : vector<1x32x64xf32> to vector<32x64xf32>
    %cst_7 = arith.constant dense<0.000000e+00> : vector<16x64xf32>
    %6 = tpu.matmul %3, %5, %cst_7 {dimension_numbers = #tpu.dot_dimension_numbers<[1], [0], [0], [1], [0, 0, 1, 1], [], []>} : vector<16x32xf32>, vector<32x64xf32>, vector<16x64xf32> -> vector<16x64xf32>
    %7 = vector.extract_strided_slice %6 {offsets = [0, 0], sizes = [16, 32], strides = [1, 1]} : vector<16x64xf32> to vector<16x32xf32>
    %8 = vector.shape_cast %7 : vector<16x32xf32> to vector<2x8x32xf32>
    %9 = vector.extract_strided_slice %6 {offsets = [0, 32], sizes = [16, 32], strides = [1, 1]} : vector<16x64xf32> to vector<16x32xf32>
    %10 = vector.shape_cast %9 : vector<16x32xf32> to vector<2x8x32xf32>
    %11 = vector.shape_cast %3 : vector<16x32xf32> to vector<2x8x32xf32>
    "tpu.trace_start"() <{level = 10 : i32, message = "bqe,bke->bqk"}> : () -> ()
    %cst_8 = arith.constant dense<0.000000e+00> : vector<2x8x8xf32>
    %12 = tpu.matmul %8, %11, %cst_8 {dimension_numbers = #tpu.dot_dimension_numbers<[2], [2], [1], [1], [0, 0, 0, 1, 1, 1], [0], [0]>} : vector<2x8x32xf32>, vector<2x8x32xf32>, vector<2x8x8xf32> -> vector<2x8x8xf32>
    "tpu.trace_stop"() : () -> ()
    %cst_9 = arith.constant dense<0xFF800000> : vector<2x8xf32>
    %13 = vector.multi_reduction <maximumf>, %12, %cst_9 [2] : vector<2x8x8xf32> to vector<2x8xf32>
    %14 = vector.shape_cast %13 : vector<2x8xf32> to vector<2x8x1xf32>
    %15 = vector.broadcast %14 : vector<2x8x1xf32> to vector<2x8x8xf32>
    %16 = arith.subf %12, %15 : vector<2x8x8xf32>
    %17 = math.exp %16 : vector<2x8x8xf32>
    %cst_10 = arith.constant dense<0.000000e+00> : vector<2x8xf32>
    %18 = vector.multi_reduction <add>, %17, %cst_10 [2] : vector<2x8x8xf32> to vector<2x8xf32>
    %19 = vector.shape_cast %18 : vector<2x8xf32> to vector<2x8x1xf32>
    %20 = tpu.reciprocal %19 {approx = true} : vector<2x8x1xf32> -> vector<2x8x1xf32>
    %21 = vector.broadcast %20 : vector<2x8x1xf32> to vector<2x8x8xf32>
    %22 = arith.mulf %17, %21 : vector<2x8x8xf32>
    "tpu.trace_start"() <{level = 10 : i32, message = "bqk,bke->bqe"}> : () -> ()
    %cst_11 = arith.constant dense<0.000000e+00> : vector<2x8x32xf32>
    %23 = tpu.matmul %22, %10, %cst_11 {dimension_numbers = #tpu.dot_dimension_numbers<[2], [1], [1], [2], [0, 0, 0, 1, 1, 2], [0], [0]>} : vector<2x8x8xf32>, vector<2x8x32xf32>, vector<2x8x32xf32> -> vector<2x8x32xf32>
    "tpu.trace_stop"() : () -> ()
    %24 = vector.shape_cast %23 : vector<2x8x32xf32> to vector<16x32xf32>
    %c1 = arith.constant 1 : index
    %c0_12 = arith.constant 0 : index
    %c0_13 = arith.constant 0 : index
    %25 = vector.load %arg3[%c1, %c0_12, %c0_13] : memref<3x32x64xf32, #tpu.memory_space<vmem>>, vector<1x32x64xf32>
    %26 = vector.shape_cast %25 : vector<1x32x64xf32> to vector<32x64xf32>
    %cst_14 = arith.constant dense<0.000000e+00> : vector<16x64xf32>
    %27 = tpu.matmul %24, %26, %cst_14 {dimension_numbers = #tpu.dot_dimension_numbers<[1], [0], [0], [1], [0, 0, 1, 1], [], []>} : vector<16x32xf32>, vector<32x64xf32>, vector<16x64xf32> -> vector<16x64xf32>
    %28 = vector.extract_strided_slice %27 {offsets = [0, 0], sizes = [16, 32], strides = [1, 1]} : vector<16x64xf32> to vector<16x32xf32>
    %29 = vector.shape_cast %28 : vector<16x32xf32> to vector<2x8x32xf32>
    %30 = vector.extract_strided_slice %27 {offsets = [0, 32], sizes = [16, 32], strides = [1, 1]} : vector<16x64xf32> to vector<16x32xf32>
    %31 = vector.shape_cast %30 : vector<16x32xf32> to vector<2x8x32xf32>
    %32 = vector.shape_cast %24 : vector<16x32xf32> to vector<2x8x32xf32>
    "tpu.trace_start"() <{level = 10 : i32, message = "bqe,bke->bqk"}> : () -> ()
    %cst_15 = arith.constant dense<0.000000e+00> : vector<2x8x8xf32>
    %33 = tpu.matmul %29, %32, %cst_15 {dimension_numbers = #tpu.dot_dimension_numbers<[2], [2], [1], [1], [0, 0, 0, 1, 1, 1], [0], [0]>} : vector<2x8x32xf32>, vector<2x8x32xf32>, vector<2x8x8xf32> -> vector<2x8x8xf32>
    "tpu.trace_stop"() : () -> ()
    %cst_16 = arith.constant dense<0xFF800000> : vector<2x8xf32>
    %34 = vector.multi_reduction <maximumf>, %33, %cst_16 [2] : vector<2x8x8xf32> to vector<2x8xf32>
    %35 = vector.shape_cast %34 : vector<2x8xf32> to vector<2x8x1xf32>
    %36 = vector.broadcast %35 : vector<2x8x1xf32> to vector<2x8x8xf32>
    %37 = arith.subf %33, %36 : vector<2x8x8xf32>
    %38 = math.exp %37 : vector<2x8x8xf32>
    %cst_17 = arith.constant dense<0.000000e+00> : vector<2x8xf32>
    %39 = vector.multi_reduction <add>, %38, %cst_17 [2] : vector<2x8x8xf32> to vector<2x8xf32>
    %40 = vector.shape_cast %39 : vector<2x8xf32> to vector<2x8x1xf32>
    %41 = tpu.reciprocal %40 {approx = true} : vector<2x8x1xf32> -> vector<2x8x1xf32>
    %42 = vector.broadcast %41 : vector<2x8x1xf32> to vector<2x8x8xf32>
    %43 = arith.mulf %38, %42 : vector<2x8x8xf32>
    "tpu.trace_start"() <{level = 10 : i32, message = "bqk,bke->bqe"}> : () -> ()
    %cst_18 = arith.constant dense<0.000000e+00> : vector<2x8x32xf32>
    %44 = tpu.matmul %43, %31, %cst_18 {dimension_numbers = #tpu.dot_dimension_numbers<[2], [1], [1], [2], [0, 0, 0, 1, 1, 2], [0], [0]>} : vector<2x8x8xf32>, vector<2x8x32xf32>, vector<2x8x32xf32> -> vector<2x8x32xf32>
    "tpu.trace_stop"() : () -> ()
    %45 = vector.shape_cast %44 : vector<2x8x32xf32> to vector<16x32xf32>
    %c2 = arith.constant 2 : index
    %c0_19 = arith.constant 0 : index
    %c0_20 = arith.constant 0 : index
    %46 = vector.load %arg3[%c2, %c0_19, %c0_20] : memref<3x32x64xf32, #tpu.memory_space<vmem>>, vector<1x32x64xf32>
    %47 = vector.shape_cast %46 : vector<1x32x64xf32> to vector<32x64xf32>
    %cst_21 = arith.constant dense<0.000000e+00> : vector<16x64xf32>
    %48 = tpu.matmul %45, %47, %cst_21 {dimension_numbers = #tpu.dot_dimension_numbers<[1], [0], [0], [1], [0, 0, 1, 1], [], []>} : vector<16x32xf32>, vector<32x64xf32>, vector<16x64xf32> -> vector<16x64xf32>
    %49 = vector.extract_strided_slice %48 {offsets = [0, 0], sizes = [16, 32], strides = [1, 1]} : vector<16x64xf32> to vector<16x32xf32>
    %50 = vector.shape_cast %49 : vector<16x32xf32> to vector<2x8x32xf32>
    %51 = vector.extract_strided_slice %48 {offsets = [0, 32], sizes = [16, 32], strides = [1, 1]} : vector<16x64xf32> to vector<16x32xf32>
    %52 = vector.shape_cast %51 : vector<16x32xf32> to vector<2x8x32xf32>
    %53 = vector.shape_cast %45 : vector<16x32xf32> to vector<2x8x32xf32>
    "tpu.trace_start"() <{level = 10 : i32, message = "bqe,bke->bqk"}> : () -> ()
    %cst_22 = arith.constant dense<0.000000e+00> : vector<2x8x8xf32>
    %54 = tpu.matmul %50, %53, %cst_22 {dimension_numbers = #tpu.dot_dimension_numbers<[2], [2], [1], [1], [0, 0, 0, 1, 1, 1], [0], [0]>} : vector<2x8x32xf32>, vector<2x8x32xf32>, vector<2x8x8xf32> -> vector<2x8x8xf32>
    "tpu.trace_stop"() : () -> ()
    %cst_23 = arith.constant dense<0xFF800000> : vector<2x8xf32>
    %55 = vector.multi_reduction <maximumf>, %54, %cst_23 [2] : vector<2x8x8xf32> to vector<2x8xf32>
    %56 = vector.shape_cast %55 : vector<2x8xf32> to vector<2x8x1xf32>
    %57 = vector.broadcast %56 : vector<2x8x1xf32> to vector<2x8x8xf32>
    %58 = arith.subf %54, %57 : vector<2x8x8xf32>
    %59 = math.exp %58 : vector<2x8x8xf32>
    %cst_24 = arith.constant dense<0.000000e+00> : vector<2x8xf32>
    %60 = vector.multi_reduction <add>, %59, %cst_24 [2] : vector<2x8x8xf32> to vector<2x8xf32>
    %61 = vector.shape_cast %60 : vector<2x8xf32> to vector<2x8x1xf32>
    %62 = tpu.reciprocal %61 {approx = true} : vector<2x8x1xf32> -> vector<2x8x1xf32>
    %63 = vector.broadcast %62 : vector<2x8x1xf32> to vector<2x8x8xf32>
    %64 = arith.mulf %59, %63 : vector<2x8x8xf32>
    "tpu.trace_start"() <{level = 10 : i32, message = "bqk,bke->bqe"}> : () -> ()
    %cst_25 = arith.constant dense<0.000000e+00> : vector<2x8x32xf32>
    %65 = tpu.matmul %64, %52, %cst_25 {dimension_numbers = #tpu.dot_dimension_numbers<[2], [1], [1], [2], [0, 0, 0, 1, 1, 2], [0], [0]>} : vector<2x8x8xf32>, vector<2x8x32xf32>, vector<2x8x32xf32> -> vector<2x8x32xf32>
    "tpu.trace_stop"() : () -> ()
    %66 = vector.shape_cast %65 : vector<2x8x32xf32> to vector<16x32xf32>
    %c0_26 = arith.constant 0 : index
    %c0_27 = arith.constant 0 : index
    %67 = vector.load %arg4[%c0_26, %c0_27] : memref<1x256xf32, #tpu.memory_space<vmem>>, vector<1x256xf32>
    %68 = vector.shape_cast %66 : vector<16x32xf32> to vector<2x256xf32>
    %cst_28 = arith.constant dense<0.000000e+00> : vector<1x2xf32>
    %69 = tpu.matmul %67, %68, %cst_28 {dimension_numbers = #tpu.dot_dimension_numbers<[1], [1], [0], [0], [0, 0, 1, 0], [], []>} : vector<1x256xf32>, vector<2x256xf32>, vector<1x2xf32> -> vector<1x2xf32>
    %c0_29 = arith.constant 0 : index
    %c0_30 = arith.constant 0 : index
    %70 = memref.load %arg5[%c0_29, %c0_30] : memref<1x1xf32, #tpu.memory_space<smem>>
    %71 = vector.broadcast %70 : f32 to vector<1x2xf32>
    %72 = arith.addf %69, %71 : vector<1x2xf32>
    %c0_31 = arith.constant 0 : index
    %c0_32 = arith.constant 0 : index
    %73 = vector.load %arg6[%c0_31, %c0_32] : memref<1x2xf32, #tpu.memory_space<vmem>>, vector<1x2xf32>
    tpu.vector_store %arg6[%c0_31, %c0_32], %72 {strides = array<i32>} : memref<1x2xf32, #tpu.memory_space<vmem>>, vector<1x2xf32>,
    return
  }
  func.func @transform_0(%arg0: i32) -> (i32, i32, i32) {
    %c0_i32 = arith.constant 0 : i32
    %c0_i32_0 = arith.constant 0 : i32
    %c0_i32_1 = arith.constant 0 : i32
    return %arg0, %c0_i32, %c0_i32_0 : i32, i32, i32
  }
  func.func @transform_1(%arg0: i32) -> (i32, i32) {
    %c0_i32 = arith.constant 0 : i32
    %c0_i32_0 = arith.constant 0 : i32
    %c0_i32_1 = arith.constant 0 : i32
    return %c0_i32, %c0_i32_0 : i32, i32
  }
  func.func @transform_2(%arg0: i32) -> (i32, i32, i32) {
    %c0_i32 = arith.constant 0 : i32
    %c0_i32_0 = arith.constant 0 : i32
    %c0_i32_1 = arith.constant 0 : i32
    %c0_i32_2 = arith.constant 0 : i32
    return %c0_i32, %c0_i32_0, %c0_i32_1 : i32, i32, i32
  }
  func.func @transform_3(%arg0: i32) -> (i32, i32) {
    %c0_i32 = arith.constant 0 : i32
    %c0_i32_0 = arith.constant 0 : i32
    %c0_i32_1 = arith.constant 0 : i32
    return %c0_i32, %c0_i32_0 : i32, i32
  }
  func.func @transform_4(%arg0: i32) -> (i32, i32) {
    %c0_i32 = arith.constant 0 : i32
    %c0_i32_0 = arith.constant 0 : i32
    %c0_i32_1 = arith.constant 0 : i32
    return %c0_i32, %c0_i32_0 : i32, i32
  }
  func.func @transform_5(%arg0: i32) -> (i32, i32) {
    %c0_i32 = arith.constant 0 : i32
    %c0_i32_0 = arith.constant 0 : i32
    return %c0_i32, %arg0 : i32, i32
  }
}

</mosaic_0001>

<llo_original>
// kernel: tpu_custom_call.1
$region0: #{tpu_custom_call.1}
  #allocation0 [shape = 'u32[]', space=smem, size = 0x4, offset = 0x4, fixed_abs, tag = 'smem constant byte address 0x4 - core index']
  #allocation1 [shape = 'u32[72,128]{1,0:T(1,128)}', space=vmem, size = 0x9000, scoped, tag = 'internal scratch']
  #allocation2 [shape = 'f32[1,1]{1,0:T(1,128)S(6)}', space=smem, size = 0x200, scoped, tag = 'scoped memory for tpu_custom_call.1']
  %s0 = inlined_call_operand.vmem [shape: f32[2,8,128], index: 0, kind: input, shape index: {}]
  %s1 = inlined_call_operand.vmem [shape: f32[128,32], index: 1, kind: input, shape index: {}]
  %s2 = inlined_call_operand.vmem [shape: f32[3,32,64], index: 2, kind: input, shape index: {}]
  %s3 = inlined_call_operand.vmem [shape: f32[1,256], index: 3, kind: input, shape index: {}]
  %s4 = inlined_call_operand.<no memory space> [shape: f32[1,1], index: 4, kind: input, shape index: {}]
  %s5 = inlined_call_operand.hbm [shape: f32[1,2], index: 5, kind: output, shape index: {}]
  %s6 = sld [smem:[#allocation0]]
  $region30: #{tpu_custom_call.1} parent=0
    _
  %s8 = ssub.s32 1, %s6
  %s9 = scalar_select 0, %s8, %s6
  %10 = sst [smem:[#allocation2]] %s4
  $region1: #{tpu_custom_call.1} parent=0
    #allocation3 [shape = 'u8[512]{0}', space=vmem, size = 0x400, scoped, tag = 'output window, operand 0, single buffered']
    #allocation4 [shape = 's32[1]{0}', space=sflag, size = 0x4, scoped, tag = 'scoped memory for tpu_custom_call.1']
    %11 = vsyncpa [#allocation4], 0
    // Predicated region
    $region2: #{tpu_custom_call.1} parent=1 // pred_check
      _
    $region3: #{tpu_custom_call.1} parent=1 // pred_check_branch
      %13 = sbr.rel (0) target = $region5
    $region4: #{tpu_custom_call.1} parent=1 // pred_region
      _
    $region5: #{tpu_custom_call.1} parent=1 // pred_fallthru
      _
    // Predicated region
    $region6: #{tpu_custom_call.1} parent=1 // pred_check
      _
    $region7: #{tpu_custom_call.1} parent=1 // pred_check_branch
      %15 = sbr.rel (0) target = $region9
    $region8: #{tpu_custom_call.1} parent=1 // pred_region
      _
    $region9: #{tpu_custom_call.1} parent=1 // pred_fallthru
      _
    // Predicated region
    $region10: #{tpu_custom_call.1} parent=1 // pred_check
      _
    $region11: #{tpu_custom_call.1} parent=1 // pred_check_branch
      %17 = sbr.rel (0) target = $region13
    $region12: #{tpu_custom_call.1} parent=1 // pred_region
      _
    $region13: #{tpu_custom_call.1} parent=1 // pred_fallthru
      _
    // Predicated region
    $region14: #{tpu_custom_call.1} parent=1 // pred_check
      _
    $region15: #{tpu_custom_call.1} parent=1 // pred_check_branch
      %19 = sbr.rel (0) target = $region17
    $region16: #{tpu_custom_call.1} parent=1 // pred_region
      _
    $region17: #{tpu_custom_call.1} parent=1 // pred_fallthru
      _
    // Predicated region
    $region18: #{tpu_custom_call.1} parent=1 // pred_check
      _
    $region19: #{tpu_custom_call.1} parent=1 // pred_check_branch
      %21 = sbr.rel (0) target = $region21
    $region20: #{tpu_custom_call.1} parent=1 // pred_region
      _
    $region21: #{tpu_custom_call.1} parent=1 // pred_fallthru
      _
    %v22 = vld [vmem:[%s0] sm:$0xff]
    %v23 = vld [vmem:[%s0 + $0x8] sm:$0xff]
    %v24 = vld [vmem:[%s1] sm:$0xff]
    %v25 = vld [vmem:[%s1 + $0x8] sm:$0xff]
    %v26 = vld [vmem:[%s1 + $0x10] sm:$0xff]
    %v27 = vld [vmem:[%s1 + $0x18] sm:$0xff]
    %v28 = vld [vmem:[%s1 + $0x20] sm:$0xff]
    %v29 = vld [vmem:[%s1 + $0x28] sm:$0xff]
    %v30 = vld [vmem:[%s1 + $0x30] sm:$0xff]
    %v31 = vld [vmem:[%s1 + $0x38] sm:$0xff]
    %v32 = vld [vmem:[%s1 + $0x40] sm:$0xff]
    %v33 = vld [vmem:[%s1 + $0x48] sm:$0xff]
    %v34 = vld [vmem:[%s1 + $0x50] sm:$0xff]
    %v35 = vld [vmem:[%s1 + $0x58] sm:$0xff]
    %v36 = vld [vmem:[%s1 + $0x60] sm:$0xff]
    %v37 = vld [vmem:[%s1 + $0x68] sm:$0xff]
    %v38 = vld [vmem:[%s1 + $0x70] sm:$0xff]
    %v39 = vld [vmem:[%s1 + $0x78] sm:$0xff]
    %40 = vmatpush.msra.mxu0 %v39
    %41 = vmatpush.msra.mxu0 %v38
    %42 = vmatpush.msra.mxu0 %v37
    %43 = vmatpush.msra.mxu0 %v36
    %44 = vmatpush.msra.mxu0 %v35
    %45 = vmatpush.msra.mxu0 %v34
    %46 = vmatpush.msra.mxu0 %v33
    %47 = vmatpush.msra.mxu0 %v32
    %48 = vmatpush.msra.mxu0 %v31
    %49 = vmatpush.msra.mxu0 %v30
    %50 = vmatpush.msra.mxu0 %v29
    %51 = vmatpush.msra.mxu0 %v28
    %52 = vmatpush.msra.mxu0 %v27
    %53 = vmatpush.msra.mxu0 %v26
    %54 = vmatpush.msra.mxu0 %v25
    %55 = vmatpush.msra.mxu0 %v24
    %56 = vmatmul.f32.gmra.mxu0 %v22
    %v57 = vpop.f32.mrf.mxu0
    %v58 = vadd.f32 0.0, %v57
    %59 = vmatmul.f32.gmra.mxu0 %v23
    %v60 = vpop.f32.mrf.mxu0
    %v61 = vadd.f32 0.0, %v60
    %62 = vdwg.mxu0
    %v63 = vld [vmem:[%s2] sm:$0xff]
    %v64 = vld [vmem:[%s2 + $0x8] sm:$0xff]
    %v65 = vld [vmem:[%s2 + $0x10] sm:$0xff]
    %v66 = vld [vmem:[%s2 + $0x18] sm:$0xff]
    %vm67 = vcmask 261120
    %v69 = vsel %vm67, %v58, 0
    %v72 = vsel %vm67, %v61, 0
    %74 = vmatpush.msra.mxu0 0.0
    %75 = vmatpush.msra.mxu0 0.0
    %76 = vmatpush.msra.mxu0 0.0
    %77 = vmatpush.msra.mxu0 0.0
    %78 = vmatpush.msra.mxu0 0.0
    %79 = vmatpush.msra.mxu0 0.0
    %80 = vmatpush.msra.mxu0 0.0
    %81 = vmatpush.msra.mxu0 0.0
    %82 = vmatpush.msra.mxu0 0.0
    %83 = vmatpush.msra.mxu0 0.0
    %84 = vmatpush.msra.mxu0 0.0
    %85 = vmatpush.msra.mxu0 0.0
    %86 = vmatpush.msra.mxu0 %v66
    %87 = vmatpush.msra.mxu0 %v65
    %88 = vmatpush.msra.mxu0 %v64
    %89 = vmatpush.msra.mxu0 %v63
    %90 = vmatmul.f32.gmra.mxu0 %v69
    %v91 = vpop.f32.mrf.mxu0
    %v92 = vadd.f32 0.0, %v91
    %93 = vmatmul.f32.gmra.mxu0 %v72
    %v94 = vpop.f32.mrf.mxu0
    %v95 = vadd.f32 0.0, %v94
    %96 = vdwg.mxu0
    %v98 = vsel %vm67, %v92, 0
    %100 = vmatpush.xpose.msra.mxu0 0.0
    %101 = vmatpush.xpose.msra.mxu0 0.0
    %102 = vmatpush.xpose.msra.mxu0 0.0
    %103 = vmatpush.xpose.msra.mxu0 0.0
    %104 = vmatpush.xpose.msra.mxu0 0.0
    %105 = vmatpush.xpose.msra.mxu0 0.0
    %106 = vmatpush.xpose.msra.mxu0 0.0
    %107 = vmatpush.xpose.msra.mxu0 0.0
    %108 = vmatpush.xpose.msra.mxu0 0.0
    %109 = vmatpush.xpose.msra.mxu0 0.0
    %110 = vmatpush.xpose.msra.mxu0 0.0
    %111 = vmatpush.xpose.msra.mxu0 0.0
    %112 = vmatpush.xpose.msra.mxu0 0.0
    %113 = vmatpush.xpose.msra.mxu0 0.0
    %114 = vmatpush.xpose.msra.mxu0 0.0
    %115 = vmatpush.xpose.msra.mxu0 %v69
    %116 = vmatmul.f32.gmra.mxu0 %v98
    %v117 = vpop.f32.mrf.mxu0
    %v118 = vadd.f32 0.0, %v117
    %119 = vdwg.mxu0
    %v121 = vsel %vm67, %v95, 0
    %123 = vmatpush.xpose.msra.mxu0 0.0
    %124 = vmatpush.xpose.msra.mxu0 0.0
    %125 = vmatpush.xpose.msra.mxu0 0.0
    %126 = vmatpush.xpose.msra.mxu0 0.0
    %127 = vmatpush.xpose.msra.mxu0 0.0
    %128 = vmatpush.xpose.msra.mxu0 0.0
    %129 = vmatpush.xpose.msra.mxu0 0.0
    %130 = vmatpush.xpose.msra.mxu0 0.0
    %131 = vmatpush.xpose.msra.mxu0 0.0
    %132 = vmatpush.xpose.msra.mxu0 0.0
    %133 = vmatpush.xpose.msra.mxu0 0.0
    %134 = vmatpush.xpose.msra.mxu0 0.0
    %135 = vmatpush.xpose.msra.mxu0 0.0
    %136 = vmatpush.xpose.msra.mxu0 0.0
    %137 = vmatpush.xpose.msra.mxu0 0.0
    %138 = vmatpush.xpose.msra.mxu0 %v72
    %139 = vmatmul.f32.gmra.mxu0 %v121
    %v140 = vpop.f32.mrf.mxu0
    %v141 = vadd.f32 0.0, %v140
    %142 = vdwg.mxu0
    %vm143 = vcmask 64512
    %v144 = vsel %vm143, %v118, -inf
    %145 = vmax.xlane.f32.xlu0 %v144
    %v146 = vpop.xlane.xlu0 %145
    %v147 = vsel %vm143, %v141, -inf
    %148 = vmax.xlane.f32.xlu0 %v147
    %v149 = vpop.xlane.xlu0 %148
    %v150 = vsub.f32 %v118, %v146
    %v151 = vsub.f32 %v141, %v149
    %v152 = vmul.f32 %v150, 1.442695
    %v153 = vpow.pop %v152
    %v154 = vmul.f32 %v151, 1.442695
    %v155 = vpow.pop %v154
    %v156 = vsel %vm143, %v153, 0.0
    %157 = vadd.xlane.f32.xlu0 %v156
    %v158 = vpop.xlane.xlu0 %157
    %v159 = vsel %vm143, %v155, 0.0
    %160 = vadd.xlane.f32.xlu0 %v159
    %v161 = vpop.xlane.xlu0 %160
    %v162 = vrcp.pop %v158
    %v163 = vrcp.pop %v161
    %v164 = vmul.f32 %v153, %v162
    %v165 = vmul.f32 %v155, %v163
    %166 = vrot.lane.b32.xlu0 %v92, 96
    %v167 = vpop.permute.xlu0 %166
    %v170 = vsel %vm143, %v164, 0
    %172 = vmatpush.msra.mxu0 0.0
    %173 = vmatpush.msra.mxu0 0.0
    %174 = vmatpush.msra.mxu0 0.0
    %175 = vmatpush.msra.mxu0 0.0
    %176 = vmatpush.msra.mxu0 0.0
    %177 = vmatpush.msra.mxu0 0.0
    %178 = vmatpush.msra.mxu0 0.0
    %179 = vmatpush.msra.mxu0 0.0
    %180 = vmatpush.msra.mxu0 0.0
    %181 = vmatpush.msra.mxu0 0.0
    %182 = vmatpush.msra.mxu0 0.0
    %183 = vmatpush.msra.mxu0 0.0
    %184 = vmatpush.msra.mxu0 0.0
    %185 = vmatpush.msra.mxu0 0.0
    %186 = vmatpush.msra.mxu0 0.0
    %187 = vmatpush.msra.mxu0 %v167
    %188 = vmatmul.f32.gmra.mxu0 %v170
    %v189 = vpop.f32.mrf.mxu0
    %v190 = vadd.f32 0.0, %v189
    %191 = vdwg.mxu0
    %192 = vrot.lane.b32.xlu0 %v95, 96
    %v193 = vpop.permute.xlu0 %192
    %v196 = vsel %vm143, %v165, 0
    %198 = vmatpush.msra.mxu0 0.0
    %199 = vmatpush.msra.mxu0 0.0
    %200 = vmatpush.msra.mxu0 0.0
    %201 = vmatpush.msra.mxu0 0.0
    %202 = vmatpush.msra.mxu0 0.0
    %203 = vmatpush.msra.mxu0 0.0
    %204 = vmatpush.msra.mxu0 0.0
    %205 = vmatpush.msra.mxu0 0.0
    %206 = vmatpush.msra.mxu0 0.0
    %207 = vmatpush.msra.mxu0 0.0
    %208 = vmatpush.msra.mxu0 0.0
    %209 = vmatpush.msra.mxu0 0.0
    %210 = vmatpush.msra.mxu0 0.0
    %211 = vmatpush.msra.mxu0 0.0
    %212 = vmatpush.msra.mxu0 0.0
    %213 = vmatpush.msra.mxu0 %v193
    %214 = vmatmul.f32.gmra.mxu0 %v196
    %v215 = vpop.f32.mrf.mxu0
    %v216 = vadd.f32 0.0, %v215
    %217 = vdwg.mxu0
    %s218 = scalar_lea.vmem %s2, 32
    %v219 = vld [vmem:[%s218] sm:$0xff]
    %v220 = vld [vmem:[%s218 + $0x8] sm:$0xff]
    %v221 = vld [vmem:[%s218 + $0x10] sm:$0xff]
    %v222 = vld [vmem:[%s218 + $0x18] sm:$0xff]
    %v224 = vsel %vm67, %v190, 0
    %v227 = vsel %vm67, %v216, 0
    %229 = vmatpush.msra.mxu0 0.0
    %230 = vmatpush.msra.mxu0 0.0
    %231 = vmatpush.msra.mxu0 0.0
    %232 = vmatpush.msra.mxu0 0.0
    %233 = vmatpush.msra.mxu0 0.0
    %234 = vmatpush.msra.mxu0 0.0
    %235 = vmatpush.msra.mxu0 0.0
    %236 = vmatpush.msra.mxu0 0.0
    %237 = vmatpush.msra.mxu0 0.0
    %238 = vmatpush.msra.mxu0 0.0
    %239 = vmatpush.msra.mxu0 0.0
    %240 = vmatpush.msra.mxu0 0.0
    %241 = vmatpush.msra.mxu0 %v222
    %242 = vmatpush.msra.mxu0 %v221
    %243 = vmatpush.msra.mxu0 %v220
    %244 = vmatpush.msra.mxu0 %v219
    %245 = vmatmul.f32.gmra.mxu0 %v224
    %v246 = vpop.f32.mrf.mxu0
    %v247 = vadd.f32 0.0, %v246
    %248 = vmatmul.f32.gmra.mxu0 %v227
    %v249 = vpop.f32.mrf.mxu0
    %v250 = vadd.f32 0.0, %v249
    %251 = vdwg.mxu0
    %v253 = vsel %vm67, %v247, 0
    %255 = vmatpush.xpose.msra.mxu0 0.0
    %256 = vmatpush.xpose.msra.mxu0 0.0
    %257 = vmatpush.xpose.msra.mxu0 0.0
    %258 = vmatpush.xpose.msra.mxu0 0.0
    %259 = vmatpush.xpose.msra.mxu0 0.0
    %260 = vmatpush.xpose.msra.mxu0 0.0
    %261 = vmatpush.xpose.msra.mxu0 0.0
    %262 = vmatpush.xpose.msra.mxu0 0.0
    %263 = vmatpush.xpose.msra.mxu0 0.0
    %264 = vmatpush.xpose.msra.mxu0 0.0
    %265 = vmatpush.xpose.msra.mxu0 0.0
    %266 = vmatpush.xpose.msra.mxu0 0.0
    %267 = vmatpush.xpose.msra.mxu0 0.0
    %268 = vmatpush.xpose.msra.mxu0 0.0
    %269 = vmatpush.xpose.msra.mxu0 0.0
    %270 = vmatpush.xpose.msra.mxu0 %v224
    %271 = vmatmul.f32.gmra.mxu0 %v253
    %v272 = vpop.f32.mrf.mxu0
    %v273 = vadd.f32 0.0, %v272
    %274 = vdwg.mxu0
    %v276 = vsel %vm67, %v250, 0
    %278 = vmatpush.xpose.msra.mxu0 0.0
    %279 = vmatpush.xpose.msra.mxu0 0.0
    %280 = vmatpush.xpose.msra.mxu0 0.0
    %281 = vmatpush.xpose.msra.mxu0 0.0
    %282 = vmatpush.xpose.msra.mxu0 0.0
    %283 = vmatpush.xpose.msra.mxu0 0.0
    %284 = vmatpush.xpose.msra.mxu0 0.0
    %285 = vmatpush.xpose.msra.mxu0 0.0
    %286 = vmatpush.xpose.msra.mxu0 0.0
    %287 = vmatpush.xpose.msra.mxu0 0.0
    %288 = vmatpush.xpose.msra.mxu0 0.0
    %289 = vmatpush.xpose.msra.mxu0 0.0
    %290 = vmatpush.xpose.msra.mxu0 0.0
    %291 = vmatpush.xpose.msra.mxu0 0.0
    %292 = vmatpush.xpose.msra.mxu0 0.0
    %293 = vmatpush.xpose.msra.mxu0 %v227
    %294 = vmatmul.f32.gmra.mxu0 %v276
    %v295 = vpop.f32.mrf.mxu0
    %v296 = vadd.f32 0.0, %v295
    %297 = vdwg.mxu0
    %v298 = vsel %vm143, %v273, -inf
    %299 = vmax.xlane.f32.xlu0 %v298
    %v300 = vpop.xlane.xlu0 %299
    %v301 = vsel %vm143, %v296, -inf
    %302 = vmax.xlane.f32.xlu0 %v301
    %v303 = vpop.xlane.xlu0 %302
    %v304 = vsub.f32 %v273, %v300
    %v305 = vsub.f32 %v296, %v303
    %v306 = vmul.f32 %v304, 1.442695
    %v307 = vpow.pop %v306
    %v308 = vmul.f32 %v305, 1.442695
    %v309 = vpow.pop %v308
    %v310 = vsel %vm143, %v307, 0.0
    %311 = vadd.xlane.f32.xlu0 %v310
    %v312 = vpop.xlane.xlu0 %311
    %v313 = vsel %vm143, %v309, 0.0
    %314 = vadd.xlane.f32.xlu0 %v313
    %v315 = vpop.xlane.xlu0 %314
    %v316 = vrcp.pop %v312
    %v317 = vrcp.pop %v315
    %v318 = vmul.f32 %v307, %v316
    %v319 = vmul.f32 %v309, %v317
    %320 = vrot.lane.b32.xlu0 %v247, 96
    %v321 = vpop.permute.xlu0 %320
    %v324 = vsel %vm143, %v318, 0
    %326 = vmatpush.msra.mxu0 0.0
    %327 = vmatpush.msra.mxu0 0.0
    %328 = vmatpush.msra.mxu0 0.0
    %329 = vmatpush.msra.mxu0 0.0
    %330 = vmatpush.msra.mxu0 0.0
    %331 = vmatpush.msra.mxu0 0.0
    %332 = vmatpush.msra.mxu0 0.0
    %333 = vmatpush.msra.mxu0 0.0
    %334 = vmatpush.msra.mxu0 0.0
    %335 = vmatpush.msra.mxu0 0.0
    %336 = vmatpush.msra.mxu0 0.0
    %337 = vmatpush.msra.mxu0 0.0
    %338 = vmatpush.msra.mxu0 0.0
    %339 = vmatpush.msra.mxu0 0.0
    %340 = vmatpush.msra.mxu0 0.0
    %341 = vmatpush.msra.mxu0 %v321
    %342 = vmatmul.f32.gmra.mxu0 %v324
    %v343 = vpop.f32.mrf.mxu0
    %v344 = vadd.f32 0.0, %v343
    %345 = vdwg.mxu0
    %346 = vrot.lane.b32.xlu0 %v250, 96
    %v347 = vpop.permute.xlu0 %346
    %v350 = vsel %vm143, %v319, 0
    %352 = vmatpush.msra.mxu0 0.0
    %353 = vmatpush.msra.mxu0 0.0
    %354 = vmatpush.msra.mxu0 0.0
    %355 = vmatpush.msra.mxu0 0.0
    %356 = vmatpush.msra.mxu0 0.0
    %357 = vmatpush.msra.mxu0 0.0
    %358 = vmatpush.msra.mxu0 0.0
    %359 = vmatpush.msra.mxu0 0.0
    %360 = vmatpush.msra.mxu0 0.0
    %361 = vmatpush.msra.mxu0 0.0
    %362 = vmatpush.msra.mxu0 0.0
    %363 = vmatpush.msra.mxu0 0.0
    %364 = vmatpush.msra.mxu0 0.0
    %365 = vmatpush.msra.mxu0 0.0
    %366 = vmatpush.msra.mxu0 0.0
    %367 = vmatpush.msra.mxu0 %v347
    %368 = vmatmul.f32.gmra.mxu0 %v350
    %v369 = vpop.f32.mrf.mxu0
    %v370 = vadd.f32 0.0, %v369
    %371 = vdwg.mxu0
    %s372 = scalar_lea.vmem %s2, 64
    %v373 = vld [vmem:[%s372] sm:$0xff]
    %v374 = vld [vmem:[%s372 + $0x8] sm:$0xff]
    %v375 = vld [vmem:[%s372 + $0x10] sm:$0xff]
    %v376 = vld [vmem:[%s372 + $0x18] sm:$0xff]
    %v378 = vsel %vm67, %v344, 0
    %v381 = vsel %vm67, %v370, 0
    %383 = vmatpush.msra.mxu0 0.0
    %384 = vmatpush.msra.mxu0 0.0
    %385 = vmatpush.msra.mxu0 0.0
    %386 = vmatpush.msra.mxu0 0.0
    %387 = vmatpush.msra.mxu0 0.0
    %388 = vmatpush.msra.mxu0 0.0
    %389 = vmatpush.msra.mxu0 0.0
    %390 = vmatpush.msra.mxu0 0.0
    %391 = vmatpush.msra.mxu0 0.0
    %392 = vmatpush.msra.mxu0 0.0
    %393 = vmatpush.msra.mxu0 0.0
    %394 = vmatpush.msra.mxu0 0.0
    %395 = vmatpush.msra.mxu0 %v376
    %396 = vmatpush.msra.mxu0 %v375
    %397 = vmatpush.msra.mxu0 %v374
    %398 = vmatpush.msra.mxu0 %v373
    %399 = vmatmul.f32.gmra.mxu0 %v378
    %v400 = vpop.f32.mrf.mxu0
    %v401 = vadd.f32 0.0, %v400
    %402 = vmatmul.f32.gmra.mxu0 %v381
    %v403 = vpop.f32.mrf.mxu0
    %v404 = vadd.f32 0.0, %v403
    %405 = vdwg.mxu0
    %v407 = vsel %vm67, %v401, 0
    %409 = vmatpush.xpose.msra.mxu0 0.0
    %410 = vmatpush.xpose.msra.mxu0 0.0
    %411 = vmatpush.xpose.msra.mxu0 0.0
    %412 = vmatpush.xpose.msra.mxu0 0.0
    %413 = vmatpush.xpose.msra.mxu0 0.0
    %414 = vmatpush.xpose.msra.mxu0 0.0
    %415 = vmatpush.xpose.msra.mxu0 0.0
    %416 = vmatpush.xpose.msra.mxu0 0.0
    %417 = vmatpush.xpose.msra.mxu0 0.0
    %418 = vmatpush.xpose.msra.mxu0 0.0
    %419 = vmatpush.xpose.msra.mxu0 0.0
    %420 = vmatpush.xpose.msra.mxu0 0.0
    %421 = vmatpush.xpose.msra.mxu0 0.0
    %422 = vmatpush.xpose.msra.mxu0 0.0
    %423 = vmatpush.xpose.msra.mxu0 0.0
    %424 = vmatpush.xpose.msra.mxu0 %v378
    %425 = vmatmul.f32.gmra.mxu0 %v407
    %v426 = vpop.f32.mrf.mxu0
    %v427 = vadd.f32 0.0, %v426
    %428 = vdwg.mxu0
    %v430 = vsel %vm67, %v404, 0
    %432 = vmatpush.xpose.msra.mxu0 0.0
    %433 = vmatpush.xpose.msra.mxu0 0.0
    %434 = vmatpush.xpose.msra.mxu0 0.0
    %435 = vmatpush.xpose.msra.mxu0 0.0
    %436 = vmatpush.xpose.msra.mxu0 0.0
    %437 = vmatpush.xpose.msra.mxu0 0.0
    %438 = vmatpush.xpose.msra.mxu0 0.0
    %439 = vmatpush.xpose.msra.mxu0 0.0
    %440 = vmatpush.xpose.msra.mxu0 0.0
    %441 = vmatpush.xpose.msra.mxu0 0.0
    %442 = vmatpush.xpose.msra.mxu0 0.0
    %443 = vmatpush.xpose.msra.mxu0 0.0
    %444 = vmatpush.xpose.msra.mxu0 0.0
    %445 = vmatpush.xpose.msra.mxu0 0.0
    %446 = vmatpush.xpose.msra.mxu0 0.0
    %447 = vmatpush.xpose.msra.mxu0 %v381
    %448 = vmatmul.f32.gmra.mxu0 %v430
    %v449 = vpop.f32.mrf.mxu0
    %v450 = vadd.f32 0.0, %v449
    %451 = vdwg.mxu0
    %v452 = vsel %vm143, %v427, -inf
    %453 = vmax.xlane.f32.xlu0 %v452
    %v454 = vpop.xlane.xlu0 %453
    %v455 = vsel %vm143, %v450, -inf
    %456 = vmax.xlane.f32.xlu0 %v455
    %v457 = vpop.xlane.xlu0 %456
    %v458 = vsub.f32 %v427, %v454
    %v459 = vsub.f32 %v450, %v457
    %v460 = vmul.f32 %v458, 1.442695
    %v461 = vpow.pop %v460
    %v462 = vmul.f32 %v459, 1.442695
    %v463 = vpow.pop %v462
    %v464 = vsel %vm143, %v461, 0.0
    %465 = vadd.xlane.f32.xlu0 %v464
    %v466 = vpop.xlane.xlu0 %465
    %v467 = vsel %vm143, %v463, 0.0
    %468 = vadd.xlane.f32.xlu0 %v467
    %v469 = vpop.xlane.xlu0 %468
    %v470 = vrcp.pop %v466
    %v471 = vrcp.pop %v469
    %v472 = vmul.f32 %v461, %v470
    %v473 = vmul.f32 %v463, %v471
    %474 = vrot.lane.b32.xlu0 %v401, 96
    %v475 = vpop.permute.xlu0 %474
    %v478 = vsel %vm143, %v472, 0
    %480 = vmatpush.msra.mxu0 0.0
    %481 = vmatpush.msra.mxu0 0.0
    %482 = vmatpush.msra.mxu0 0.0
    %483 = vmatpush.msra.mxu0 0.0
    %484 = vmatpush.msra.mxu0 0.0
    %485 = vmatpush.msra.mxu0 0.0
    %486 = vmatpush.msra.mxu0 0.0
    %487 = vmatpush.msra.mxu0 0.0
    %488 = vmatpush.msra.mxu0 0.0
    %489 = vmatpush.msra.mxu0 0.0
    %490 = vmatpush.msra.mxu0 0.0
    %491 = vmatpush.msra.mxu0 0.0
    %492 = vmatpush.msra.mxu0 0.0
    %493 = vmatpush.msra.mxu0 0.0
    %494 = vmatpush.msra.mxu0 0.0
    %495 = vmatpush.msra.mxu0 %v475
    %496 = vmatmul.f32.gmra.mxu0 %v478
    %v497 = vpop.f32.mrf.mxu0
    %v498 = vadd.f32 0.0, %v497
    %499 = vdwg.mxu0
    %500 = vrot.lane.b32.xlu0 %v404, 96
    %v501 = vpop.permute.xlu0 %500
    %v504 = vsel %vm143, %v473, 0
    %506 = vmatpush.msra.mxu0 0.0
    %507 = vmatpush.msra.mxu0 0.0
    %508 = vmatpush.msra.mxu0 0.0
    %509 = vmatpush.msra.mxu0 0.0
    %510 = vmatpush.msra.mxu0 0.0
    %511 = vmatpush.msra.mxu0 0.0
    %512 = vmatpush.msra.mxu0 0.0
    %513 = vmatpush.msra.mxu0 0.0
    %514 = vmatpush.msra.mxu0 0.0
    %515 = vmatpush.msra.mxu0 0.0
    %516 = vmatpush.msra.mxu0 0.0
    %517 = vmatpush.msra.mxu0 0.0
    %518 = vmatpush.msra.mxu0 0.0
    %519 = vmatpush.msra.mxu0 0.0
    %520 = vmatpush.msra.mxu0 0.0
    %521 = vmatpush.msra.mxu0 %v501
    %522 = vmatmul.f32.gmra.mxu0 %v504
    %v523 = vpop.f32.mrf.mxu0
    %v524 = vadd.f32 0.0, %v523
    %525 = vdwg.mxu0
    %v526 = vld [vmem:[%s3] sm:$0x3]
    %v527 = vrot.slane %v498, 4
    %vm528 = vcmask 1047556
    %v529 = vsel %vm528, 0.0, %v527
    %v531 = vunpack.c.l.s4 1983009808
    %v532 = vunpack.c.0.s8 %v531
    %v533 = vperm.slane %v498, %v532
    %v535 = vunpack.c.l.s4 1983009808
    %v536 = vunpack.c.0.s8 %v535
    %v537 = vperm.slane %v529, %v536
    %v538 = vrot.slane %v524, 4
    %v539 = vsel %vm528, 0.0, %v538
    %v541 = vunpack.c.l.s4 1983009808
    %v542 = vunpack.c.0.s8 %v541
    %v543 = vperm.slane %v524, %v542
    %v545 = vunpack.c.l.s4 1983009808
    %v546 = vunpack.c.0.s8 %v545
    %v547 = vperm.slane %v539, %v546
    %v548 = vrot.slane %v543, 4
    %v549 = vsel %vm528, %v548, %v533
    %v550 = vrot.slane %v533, 4
    %v551 = vsel %vm528, %v543, %v550
    %v553 = vunpack.c.l.s4 1934713408
    %v554 = vunpack.c.0.s8 %v553
    %v555 = vperm.slane %v549, %v554
    %v557 = vunpack.c.l.s4 1934713408
    %v558 = vunpack.c.0.s8 %v557
    %v559 = vperm.slane %v551, %v558
    %v560 = vrot.slane %v547, 4
    %v561 = vsel %vm528, %v560, %v537
    %v562 = vrot.slane %v537, 4
    %v563 = vsel %vm528, %v547, %v562
    %v565 = vunpack.c.l.s4 1934713408
    %v566 = vunpack.c.0.s8 %v565
    %v567 = vperm.slane %v561, %v566
    %v569 = vunpack.c.l.s4 1934713408
    %v570 = vunpack.c.0.s8 %v569
    %v571 = vperm.slane %v563, %v570
    %v572 = vrot.slane %v555, 4
    %v573 = vsel %vm528, 0.0, %v572
    %v574 = vrot.slane %v559, 4
    %v575 = vsel %vm528, 0.0, %v574
    %v576 = vrot.slane %v567, 4
    %v577 = vsel %vm528, 0.0, %v576
    %v578 = vrot.slane %v571, 4
    %v579 = vsel %vm528, 0.0, %v578
    %581 = vrot.lane.b32.xlu0 %v573, 32
    %v582 = vpop.permute.xlu0 %581
    %585 = vrot.lane.b32.xlu0 %v559, 64
    %v586 = vpop.permute.xlu0 %585
    %589 = vrot.lane.b32.xlu0 %v575, 96
    %v590 = vpop.permute.xlu0 %589
    %593 = vrot.lane.b32.xlu0 %v577, 32
    %v594 = vpop.permute.xlu0 %593
    %597 = vrot.lane.b32.xlu0 %v571, 64
    %v598 = vpop.permute.xlu0 %597
    %601 = vrot.lane.b32.xlu0 %v579, 96
    %v602 = vpop.permute.xlu0 %601
    %v604 = vsel %vm67, %v555, %v582
    %vm605 = vcmask 523264
    %v606 = vsel %vm605, %v604, %v586
    %vm607 = vcmask 785408
    %v608 = vsel %vm607, %v606, %v590
    %v609 = vsel %vm67, %v567, %v594
    %v610 = vsel %vm605, %v609, %v598
    %v611 = vsel %vm607, %v610, %v602
    %s612 = sld [smem:[#allocation2]]
    %v613 = vstv %s612
    %v615 = vperm.slane %v526, 0
    %v616 = vperm.slane %v526, 1
    %619 = vmatpush.xpose.msra.mxu0 0.0
    %620 = vmatpush.xpose.msra.mxu0 0.0
    %621 = vmatpush.xpose.msra.mxu0 0.0
    %622 = vmatpush.xpose.msra.mxu0 0.0
    %623 = vmatpush.xpose.msra.mxu0 0.0
    %624 = vmatpush.xpose.msra.mxu0 0.0
    %625 = vmatpush.xpose.msra.mxu0 0.0
    %626 = vmatpush.xpose.msra.mxu0 0.0
    %627 = vmatpush.xpose.msra.mxu0 0.0
    %628 = vmatpush.xpose.msra.mxu0 0.0
    %629 = vmatpush.xpose.msra.mxu0 0.0
    %630 = vmatpush.xpose.msra.mxu0 0.0
    %631 = vmatpush.xpose.msra.mxu0 0.0
    %632 = vmatpush.xpose.msra.mxu0 0.0
    %633 = vmatpush.xpose.msra.mxu0 0.0
    %634 = vmatpush.xpose.msra.mxu0 %v608
    %635 = vmatmul.f32.gmra.mxu0 %v615
    %v636 = vpop.f32.mrf.mxu0
    %v637 = vadd.f32 %v613, %v636
    %638 = vdwg.mxu0
    %639 = vmatpush.xpose.msra.mxu0 0.0
    %640 = vmatpush.xpose.msra.mxu0 0.0
    %641 = vmatpush.xpose.msra.mxu0 0.0
    %642 = vmatpush.xpose.msra.mxu0 0.0
    %643 = vmatpush.xpose.msra.mxu0 0.0
    %644 = vmatpush.xpose.msra.mxu0 0.0
    %645 = vmatpush.xpose.msra.mxu0 0.0
    %646 = vmatpush.xpose.msra.mxu0 0.0
    %647 = vmatpush.xpose.msra.mxu0 0.0
    %648 = vmatpush.xpose.msra.mxu0 0.0
    %649 = vmatpush.xpose.msra.mxu0 0.0
    %650 = vmatpush.xpose.msra.mxu0 0.0
    %651 = vmatpush.xpose.msra.mxu0 0.0
    %652 = vmatpush.xpose.msra.mxu0 0.0
    %653 = vmatpush.xpose.msra.mxu0 0.0
    %654 = vmatpush.xpose.msra.mxu0 %v611
    %655 = vmatmul.f32.gmra.mxu0 %v616
    %v656 = vpop.f32.mrf.mxu0
    %v657 = vadd.f32 %v637, %v656
    %658 = vdwg.mxu0
    %vm659 = vcmask 8192
    %660 = vst.msk [vmem:[#allocation3] sm:$0x1] %vm659, %v657
    // Predicated region
    $region22: #{tpu_custom_call.1} parent=1 // pred_check
      _
    $region23: #{tpu_custom_call.1} parent=1 // pred_check_branch
      %662 = sbr.rel (0) target = $region25
    $region24: #{tpu_custom_call.1} parent=1 // pred_region
      %664 = vsyncadd [#allocation4], 0
      %s666 = sshll.u32 [#allocation3], 4
      %s667 = int_to_ptr.vmem [resolvable:$true] %s666
      %s668 = sshll.u32 %s5, 4
      %s669 = int_to_ptr.hbm [resolvable:$true] %s668
      %671 = dma.vmem_to_hbm [thread:$0]  %s667, 16, %s669, [#allocation4]
    $region25: #{tpu_custom_call.1} parent=1 // pred_fallthru
      _
    // Predicated region
    $region26: #{tpu_custom_call.1} parent=1 // pred_check
      _
    $region27: #{tpu_custom_call.1} parent=1 // pred_check_branch
      %673 = sbr.rel (0) target = $region29
    $region28: #{tpu_custom_call.1} parent=1 // pred_region
      %675 = dma.done [#allocation4], 16
    $region29: #{tpu_custom_call.1} parent=1 // pred_fallthru
      _
    %676 = vsyncpa [#allocation4], 1

</llo_original>
